<compile_context>
chip_gen: v7x
topology: tpu7x:2x2x1
jax: 0.10.0
libtpu: 0.0.40
codegen_flags: <defaults>
</compile_context>

<pallas_src>
import jax
import jax.numpy as jnp
from jax.experimental import pallas as pl
from jax.experimental.pallas import tpu as pltpu

_MIB = 1024 * 1024


def _experts_kernel_out_acc(x_ref, wg_ref, wu_ref, wd_ref, o_ref):
    """float32 output: accumulate the I-reduction directly into o_ref."""
    # x_ref:  (1, Tt, H)  resident across the I axis
    # wg_ref: (1, H,  Ti) gate half of gate_up_proj for this I tile
    # wu_ref: (1, H,  Ti) up   half of gate_up_proj for this I tile
    # wd_ref: (1, Ti, H)  down_proj tile
    # o_ref:  (1, Tt, H)  fp32, resident across I (accumulator), written once
    i = pl.program_id(2)

    @pl.when(i == 0)
    def _():
        o_ref[...] = jnp.zeros_like(o_ref)

    x = x_ref[0]                                                   # (Tt, H)
    gate = jnp.dot(x, wg_ref[0], preferred_element_type=jnp.float32)
    up = jnp.dot(x, wu_ref[0], preferred_element_type=jnp.float32)
    # SiLU(gate) * up  (sigmoid on EUP, muls on VPU -- free under MXU bound).
    h = up * (gate * jax.nn.sigmoid(gate))                         # (Tt, Ti)
    o_ref[0] += jnp.dot(h.astype(wd_ref.dtype), wd_ref[0],
                        preferred_element_type=jnp.float32)


def _experts_kernel_scratch_acc(x_ref, wg_ref, wu_ref, wd_ref, o_ref, acc_ref):
    """Narrow output dtype (e.g. bf16): accumulate in an fp32 VMEM scratch."""
    i = pl.program_id(2)

    @pl.when(i == 0)
    def _():
        acc_ref[...] = jnp.zeros_like(acc_ref)

    x = x_ref[0]
    gate = jnp.dot(x, wg_ref[0], preferred_element_type=jnp.float32)
    up = jnp.dot(x, wu_ref[0], preferred_element_type=jnp.float32)
    h = up * (gate * jax.nn.sigmoid(gate))
    acc_ref[...] += jnp.dot(h.astype(wd_ref.dtype), wd_ref[0],
                            preferred_element_type=jnp.float32)

    @pl.when(i == pl.num_programs(2) - 1)
    def _():
        o_ref[0] = acc_ref[...].astype(o_ref.dtype)


def _vmem_capacity_bytes():
    try:
        return int(pltpu.get_tpu_info().vmem_capacity_bytes)
    except Exception:
        return 64 * _MIB          # conservative fallback (v7x-sized)


def _sublane_base(dtype):
    # bf16 packs 2 rows / sublane, 8-bit packs 4 -- keep token tiles aligned.
    return {4: 8, 2: 16, 1: 32}.get(jnp.dtype(dtype).itemsize, 8)


def _footprint_bytes(tile_t, tile_i, hidden, x_bytes, w_bytes, o_bytes,
                     needs_scratch):
    # Double-buffered input/output blocks + (optional) fp32 accumulator.
    f = 2 * tile_t * hidden * (x_bytes + o_bytes)
    f += 3 * 2 * hidden * tile_i * w_bytes          # gate + up + down tiles
    if needs_scratch:
        f += tile_t * hidden * 4
    return f


def _choose_tiles(tokens, inter, hidden, x_bytes, w_bytes, o_bytes,
                  needs_scratch, budget, sub_base):
    inter_cands = [c for c in (1024, 512, 256, 128)
                   if c <= inter and inter % c == 0] or [inter]
    token_cands = [tokens] + [
        c for c in (2048, 1024, 512, 256, 128, 64, 32, 16, 8)
        if c < tokens and c % sub_base == 0 and tokens % c == 0]
    # Prefer the largest token tile: weight HBM traffic scales with
    # tokens / tile_tokens, while tile_inter does not affect total weight
    # bytes.  Then prefer the largest intermediate tile that still fits.
    for tt in token_cands:
        for ti in inter_cands:
            if _footprint_bytes(tt, ti, hidden, x_bytes, w_bytes, o_bytes,
                                needs_scratch) <= budget:
                return tt, ti
    return token_cands[-1], inter_cands[-1]


def llama4_text_experts(hidden_states, gate_up_proj, down_proj, *,
                        tile_tokens=None, tile_inter=None,
                        vmem_limit_bytes=None):
    """hidden_states: (E*T, H), gate_up_proj: (E, H, 2I), down_proj: (E, I, H).

    Returns (E*T, H), matching Llama4TextExperts.forward.
    """
    num_experts, hidden_size, two_inter = gate_up_proj.shape
    inter = two_inter // 2
    assert down_proj.shape == (num_experts, inter, hidden_size)

    x = hidden_states.reshape(num_experts, -1, hidden_size)
    tokens = x.shape[1]

    out_dtype = hidden_states.dtype
    needs_scratch = jnp.dtype(out_dtype) != jnp.dtype(jnp.float32)

    x_bytes = jnp.dtype(hidden_states.dtype).itemsize
    w_bytes = jnp.dtype(gate_up_proj.dtype).itemsize
    o_bytes = jnp.dtype(out_dtype).itemsize

    # Always set an explicit VMEM limit (defaults are only 16/32 MiB).
    if vmem_limit_bytes is None:
        physical = _vmem_capacity_bytes()
        vmem_limit_bytes = max(min(physical - 12 * _MIB, 112 * _MIB),
                               32 * _MIB)
    budget = int(vmem_limit_bytes * 0.9)

    sub_base = _sublane_base(hidden_states.dtype)
    auto_tt, auto_ti = _choose_tiles(tokens, inter, hidden_size,
                                     x_bytes, w_bytes, o_bytes,
                                     needs_scratch, budget, sub_base)
    if tile_tokens is None:
        tile_tokens = auto_tt
    if tile_inter is None:
        tile_inter = auto_ti
    assert tokens % tile_tokens == 0, "tokens-per-expert must divide by tile"
    assert inter % tile_inter == 0, "intermediate size must divide by tile"

    n_i_blocks = inter // tile_inter
    grid = (num_experts, tokens // tile_tokens, n_i_blocks)

    cost = pl.CostEstimate(
        flops=2 * num_experts * tokens * hidden_size * (3 * inter),
        transcendentals=num_experts * tokens * inter,
        bytes_accessed=(2 * hidden_states.size * x_bytes
                        + gate_up_proj.size * w_bytes
                        + down_proj.size * w_bytes),
    )

    in_specs = [
        # x block is constant across the I axis -> stays resident in VMEM.
        pl.BlockSpec((1, tile_tokens, hidden_size),
                     lambda e, t, i: (e, t, 0)),
        # gate half of gate_up_proj (first I columns of the 2I axis) ...
        pl.BlockSpec((1, hidden_size, tile_inter),
                     lambda e, t, i: (e, 0, i)),
        # ... and up half: SAME array, block index offset by I/tile_inter
        # (no wrapper-side weight copy).
        pl.BlockSpec((1, hidden_size, tile_inter),
                     lambda e, t, i: (e, 0, i + n_i_blocks)),
        pl.BlockSpec((1, tile_inter, hidden_size),
                     lambda e, t, i: (e, i, 0)),
    ]
    # Output block constant across I -> resident accumulator view, written
    # back to HBM once per (E, T-tile).
    out_spec = pl.BlockSpec((1, tile_tokens, hidden_size),
                            lambda e, t, i: (e, t, 0))

    if needs_scratch:
        kernel = _experts_kernel_scratch_acc
        scratch = [pltpu.VMEM((tile_tokens, hidden_size), jnp.float32)]
    else:
        kernel = _experts_kernel_out_acc
        scratch = []

    out = pl.pallas_call(
        kernel,
        out_shape=jax.ShapeDtypeStruct((num_experts, tokens, hidden_size),
                                       out_dtype),
        grid_spec=pltpu.PrefetchScalarGridSpec(
            num_scalar_prefetch=0,
            grid=grid,
            in_specs=in_specs,
            out_specs=out_spec,
            scratch_shapes=scratch,
        ),
        compiler_params=pltpu.CompilerParams(
            # Megacore shards the expert axis; T and I run sequentially per
            # core, so each expert's weights are streamed from HBM once.
            dimension_semantics=("parallel", "arbitrary", "arbitrary"),
            vmem_limit_bytes=int(vmem_limit_bytes),
        ),
        cost_estimate=cost,
    )(x, gate_up_proj, gate_up_proj, down_proj)

    return out.reshape(-1, hidden_size)


if __name__ == "__main__":
    # Small, tile-friendly shapes consistent with the module.
    num_experts = 2
    hidden_size = 128
    intermediate_size = 256
    tokens_per_expert = 16          # total tokens = E * T = 32

    key = jax.random.PRNGKey(0)
    k_x, k_gu, k_dn = jax.random.split(key, 3)

    hidden_states = jax.random.normal(
        k_x, (num_experts * tokens_per_expert, hidden_size), dtype=jnp.float32)
    gate_up_proj = 0.05 * jax.random.normal(
        k_gu, (num_experts, hidden_size, 2 * intermediate_size),
        dtype=jnp.float32)
    down_proj = 0.05 * jax.random.normal(
        k_dn, (num_experts, intermediate_size, hidden_size), dtype=jnp.float32)

    # Reference in plain JAX (same math as the PyTorch forward), fp32.
    x3 = hidden_states.reshape(num_experts, -1, hidden_size)
    gate_up = jnp.einsum("eth,ehf->etf", x3, gate_up_proj)
    gate, up = jnp.split(gate_up, 2, axis=-1)
    ref = jnp.einsum("eti,eih->eth", up * jax.nn.silu(gate), down_proj)
    ref = ref.reshape(-1, hidden_size)

    # fp32 path (accumulates directly into the output block); small explicit
    # tiles so both the T grid axis and the I reduction axis take >1 step.
    out_f32 = llama4_text_experts(hidden_states, gate_up_proj, down_proj,
                                  tile_tokens=8, tile_inter=128)
    out_f32 = jax.block_until_ready(out_f32)
    assert jnp.allclose(out_f32, ref, atol=1e-4, rtol=1e-4), "fp32 mismatch"

    # bf16 path (fp32 VMEM scratch accumulator), auto tile_tokens and a
    # multi-step I reduction.
    hs_bf16 = hidden_states.astype(jnp.bfloat16)
    gu_bf16 = gate_up_proj.astype(jnp.bfloat16)
    dn_bf16 = down_proj.astype(jnp.bfloat16)
    out_bf16 = llama4_text_experts(hs_bf16, gu_bf16, dn_bf16, tile_inter=128)
    out_bf16 = jax.block_until_ready(out_bf16)
    assert jnp.allclose(out_bf16.astype(jnp.float32), ref,
                        atol=5e-2, rtol=5e-2), "bf16 mismatch"

    print("KERNEL_OK")
</pallas_src>

<mosaic_0001>
module attributes {stable_mosaic.version = 11 : i64} {
  func.func @_experts_kernel_out_acc(%arg0: i32, %arg1: i32, %arg2: i32, %arg3: memref<1x8x128xf32, #tpu.memory_space<vmem>>, %arg4: memref<1x128x128xf32, #tpu.memory_space<vmem>>, %arg5: memref<1x128x128xf32, #tpu.memory_space<vmem>>, %arg6: memref<1x128x128xf32, #tpu.memory_space<vmem>>, %arg7: memref<1x8x128xf32, #tpu.memory_space<vmem>>) attributes {dimension_semantics = [#tpu.dimension_semantics<parallel>, #tpu.dimension_semantics<arbitrary>, #tpu.dimension_semantics<arbitrary>], iteration_bounds = array<i64: 2, 2, 2>, scalar_prefetch = 0 : i64, scratch_operands = 0 : i64, tpu.core_type = #tpu.core_type<tc>, window_params = [{transform_indices = @transform_0, window_bounds = array<i64: 1, 8, 128>}, {transform_indices = @transform_1, window_bounds = array<i64: 1, 128, 128>}, {transform_indices = @transform_2, window_bounds = array<i64: 1, 128, 128>}, {transform_indices = @transform_3, window_bounds = array<i64: 1, 128, 128>}, {transform_indices = @transform_4, window_bounds = array<i64: 1, 8, 128>}]} {
    %c0_i32 = arith.constant 0 : i32
    %0 = arith.cmpi eq, %arg2, %c0_i32 : i32
    %1 = arith.extui %0 : i1 to i32
    %c0_i32_0 = arith.constant 0 : i32
    %2 = arith.cmpi ne, %1, %c0_i32_0 : i32
    scf.if %2 {
      %cst_21 = arith.constant 0.000000e+00 : f32
      %27 = vector.broadcast %cst_21 : f32 to vector<1x8x128xf32>
      %c0_22 = arith.constant 0 : index
      %c0_23 = arith.constant 0 : index
      %c0_24 = arith.constant 0 : index
      %28 = vector.load %arg7[%c0_22, %c0_23, %c0_24] : memref<1x8x128xf32, #tpu.memory_space<vmem>>, vector<1x8x128xf32>
      tpu.vector_store %arg7[%c0_22, %c0_23, %c0_24], %27 {strides = array<i32>} : memref<1x8x128xf32, #tpu.memory_space<vmem>>, vector<1x8x128xf32>,
    } else {
    }
    %c0 = arith.constant 0 : index
    %c0_1 = arith.constant 0 : index
    %c0_2 = arith.constant 0 : index
    %3 = vector.load %arg3[%c0, %c0_1, %c0_2] : memref<1x8x128xf32, #tpu.memory_space<vmem>>, vector<1x8x128xf32>
    %4 = vector.shape_cast %3 : vector<1x8x128xf32> to vector<8x128xf32>
    %c0_3 = arith.constant 0 : index
    %c0_4 = arith.constant 0 : index
    %c0_5 = arith.constant 0 : index
    %5 = vector.load %arg4[%c0_3, %c0_4, %c0_5] : memref<1x128x128xf32, #tpu.memory_space<vmem>>, vector<1x128x128xf32>
    %6 = vector.shape_cast %5 : vector<1x128x128xf32> to vector<128x128xf32>
    %cst = arith.constant dense<0.000000e+00> : vector<8x128xf32>
    %7 = tpu.matmul %4, %6, %cst {dimension_numbers = #tpu.dot_dimension_numbers<[1], [0], [0], [1], [0, 0, 1, 1], [], []>} : vector<8x128xf32>, vector<128x128xf32>, vector<8x128xf32> -> vector<8x128xf32>
    %c0_6 = arith.constant 0 : index
    %c0_7 = arith.constant 0 : index
    %c0_8 = arith.constant 0 : index
    %8 = vector.load %arg5[%c0_6, %c0_7, %c0_8] : memref<1x128x128xf32, #tpu.memory_space<vmem>>, vector<1x128x128xf32>
    %9 = vector.shape_cast %8 : vector<1x128x128xf32> to vector<128x128xf32>
    %cst_9 = arith.constant dense<0.000000e+00> : vector<8x128xf32>
    %10 = tpu.matmul %4, %9, %cst_9 {dimension_numbers = #tpu.dot_dimension_numbers<[1], [0], [0], [1], [0, 0, 1, 1], [], []>} : vector<8x128xf32>, vector<128x128xf32>, vector<8x128xf32> -> vector<8x128xf32>
    %11 = arith.negf %7 : vector<8x128xf32>
    %12 = math.exp %11 : vector<8x128xf32>
    %cst_10 = arith.constant 1.000000e+00 : f32
    %13 = vector.broadcast %cst_10 : f32 to vector<8x128xf32>
    %14 = arith.addf %13, %12 : vector<8x128xf32>
    %15 = arith.divf %13, %14 : vector<8x128xf32>
    %16 = arith.mulf %7, %15 : vector<8x128xf32>
    %17 = arith.mulf %10, %16 : vector<8x128xf32>
    %c0_11 = arith.constant 0 : index
    %c0_12 = arith.constant 0 : index
    %c0_13 = arith.constant 0 : index
    %18 = vector.load %arg7[%c0_11, %c0_12, %c0_13] : memref<1x8x128xf32, #tpu.memory_space<vmem>>, vector<1x8x128xf32>
    %19 = vector.shape_cast %18 : vector<1x8x128xf32> to vector<8x128xf32>
    %c0_14 = arith.constant 0 : index
    %c0_15 = arith.constant 0 : index
    %c0_16 = arith.constant 0 : index
    %20 = vector.load %arg6[%c0_14, %c0_15, %c0_16] : memref<1x128x128xf32, #tpu.memory_space<vmem>>, vector<1x128x128xf32>
    %21 = vector.shape_cast %20 : vector<1x128x128xf32> to vector<128x128xf32>
    %cst_17 = arith.constant dense<0.000000e+00> : vector<8x128xf32>
    %22 = tpu.matmul %17, %21, %cst_17 {dimension_numbers = #tpu.dot_dimension_numbers<[1], [0], [0], [1], [0, 0, 1, 1], [], []>} : vector<8x128xf32>, vector<128x128xf32>, vector<8x128xf32> -> vector<8x128xf32>
    %23 = arith.addf %19, %22 : vector<8x128xf32>
    %c0_18 = arith.constant 0 : index
    %c0_19 = arith.constant 0 : index
    %c0_20 = arith.constant 0 : index
    %24 = vector.load %arg7[%c0_18, %c0_19, %c0_20] : memref<1x8x128xf32, #tpu.memory_space<vmem>>, vector<1x8x128xf32>
    %25 = vector.shape_cast %24 : vector<1x8x128xf32> to vector<8x128xf32>
    %26 = vector.shape_cast %23 : vector<8x128xf32> to vector<1x8x128xf32>
    tpu.vector_store %arg7[%c0_18, %c0_19, %c0_20], %26 {strides = array<i32>} : memref<1x8x128xf32, #tpu.memory_space<vmem>>, vector<1x8x128xf32>,
    return
  }
  func.func @transform_0(%arg0: i32, %arg1: i32, %arg2: i32) -> (i32, i32, i32) {
    %c0_i32 = arith.constant 0 : i32
    %c0_i32_0 = arith.constant 0 : i32
    return %arg0, %arg1, %c0_i32 : i32, i32, i32
  }
  func.func @transform_1(%arg0: i32, %arg1: i32, %arg2: i32) -> (i32, i32, i32) {
    %c0_i32 = arith.constant 0 : i32
    %c0_i32_0 = arith.constant 0 : i32
    return %arg0, %c0_i32, %arg2 : i32, i32, i32
  }
  func.func @transform_2(%arg0: i32, %arg1: i32, %arg2: i32) -> (i32, i32, i32) {
    %c2_i32 = arith.constant 2 : i32
    %0 = arith.addi %arg2, %c2_i32 : i32
    %c0_i32 = arith.constant 0 : i32
    %c0_i32_0 = arith.constant 0 : i32
    return %arg0, %c0_i32, %0 : i32, i32, i32
  }
  func.func @transform_3(%arg0: i32, %arg1: i32, %arg2: i32) -> (i32, i32, i32) {
    %c0_i32 = arith.constant 0 : i32
    %c0_i32_0 = arith.constant 0 : i32
    return %arg0, %arg2, %c0_i32 : i32, i32, i32
  }
  func.func @transform_4(%arg0: i32, %arg1: i32, %arg2: i32) -> (i32, i32, i32) {
    %c0_i32 = arith.constant 0 : i32
    %c0_i32_0 = arith.constant 0 : i32
    return %arg0, %arg1, %c0_i32 : i32, i32, i32
  }
}

</mosaic_0001>

<llo_original>
// kernel: tpu_custom_call.1
$region0: #{tpu_custom_call.1}
  #allocation0 [shape = 'u32[]', space=smem, size = 0x4, offset = 0x4, fixed_abs, tag = 'smem constant byte address 0x4 - core index']
  #allocation1 [shape = 'u32[144,128]{1,0:T(1,128)}', space=vmem, size = 0x12000, scoped, tag = 'internal scratch']
  %s0 = inlined_call_operand.hbm [shape: f32[2,16,128], index: 0, kind: input, shape index: {}]
  %s1 = inlined_call_operand.hbm [shape: f32[2,128,512], index: 1, kind: input, shape index: {}]
  %s2 = inlined_call_operand.hbm [shape: f32[2,128,512], index: 2, kind: input, shape index: {}]
  %s3 = inlined_call_operand.hbm [shape: f32[2,256,128], index: 3, kind: input, shape index: {}]
  %s4 = inlined_call_operand.hbm [shape: f32[2,16,128], index: 4, kind: output, shape index: {}]
  %s5 = sld [smem:[#allocation0]]
  $region69: #{tpu_custom_call.1} parent=0
    _
  %s7 = ssub.s32 1, %s5
  %s8 = scalar_select 0, %s7, %s5
  $region1: #{tpu_custom_call.1} parent=0
    #allocation2 [shape = 'u8[8192]{0}', space=vmem, size = 0x2000, scoped, tag = 'input window, operand 0']
    #allocation3 [shape = 's32[2]{0}', space=sflag, size = 0x8, scoped, tag = 'scoped memory for tpu_custom_call.1']
    #allocation4 [shape = 's32[2]{0}', space=sflag, size = 0x8, scoped, tag = 'scoped memory for tpu_custom_call.1']
    #allocation5 [shape = 'u8[131072]{0}', space=vmem, size = 0x20000, scoped, tag = 'input window, operand 1']
    #allocation6 [shape = 's32[2]{0}', space=sflag, size = 0x8, scoped, tag = 'scoped memory for tpu_custom_call.1']
    #allocation7 [shape = 'u8[131072]{0}', space=vmem, size = 0x20000, scoped, tag = 'input window, operand 2']
    #allocation8 [shape = 'u8[131072]{0}', space=vmem, size = 0x20000, scoped, tag = 'input window, operand 3']
    #allocation9 [shape = 's32[2]{0}', space=sflag, size = 0x8, scoped, tag = 'scoped memory for tpu_custom_call.1']
    #allocation10 [shape = 'u8[8192]{0}', space=vmem, size = 0x2000, scoped, tag = 'output window, operand 0']
    %9 = vsyncpa [#allocation3], 0
    %s10 = scalar_lea.sflag [#allocation3], 1
    %11 = vsyncpa %s10, 0
    %12 = vsyncpa [#allocation6], 0
    %s13 = scalar_lea.sflag [#allocation6], 1
    %14 = vsyncpa %s13, 0
    %15 = vsyncpa [#allocation9], 0
    %s16 = scalar_lea.sflag [#allocation9], 1
    %17 = vsyncpa %s16, 0
    %18 = vsyncpa [#allocation4], 0
    %s19 = scalar_lea.sflag [#allocation4], 1
    %20 = vsyncpa %s19, 0
    loop: start=0, step=1, limit=10
    $region2: #{tpu_custom_call.1} parent=1 // loop_pre_header
      _
    $region3: #{tpu_custom_call.1} parent=1 // loop_header
      %s22 = sphi 0, %s26
      %p23 = scmp.ge.s32.totalorder %s22, 10
      %s29 = sphi 0, %s48
      %s30 = sphi 0, %s44
      %s31 = sphi 0, %s40
      %s32 = sphi 0, %s29
      %s33 = sphi 0, %s30
      %s34 = sphi 0, %s31
      %s35 = sphi 0, %s32
      %s36 = sphi 0, %s33
      %s37 = sphi 0, %s34
      %s53 = sphi 0, %s55
      %s56 = sphi 0, %s53
      %s57 = sphi 0, %s56
      %s73 = sphi 0, %s57
      %s81 = sphi 0, %s83
      %s84 = sphi 0, %s81
      %s85 = sphi 0, %s84
      %s101 = sphi 0, %s85
      %s111 = sphi 0, %s113
      %s114 = sphi 0, %s111
      %s115 = sphi 0, %s114
      %s131 = sphi 0, %s115
      %s139 = sphi 0, %s141
      %s142 = sphi 0, %s139
      %s143 = sphi 0, %s142
      %s159 = sphi 0, %s143
      %s167 = sphi 0, %s169
      %s170 = sphi 0, %s167
      %s171 = sphi 0, %s170
      %s187 = sphi 0, %s171
    $region4: #{tpu_custom_call.1} parent=1 // loop_header_branch
      %25 = sbr.rel (%p23) target = $region8
    $region5: #{tpu_custom_call.1} parent=1 // loop_body
      %s27 = ssub.s32 %s22, 1
      %s28 = ssub.s32 %s22, 2
      %s38 = sadd.s32 1, %s31
      %p39 = scmp.ge.s32.totalorder %s38, 2
      %s40 = scalar_select %p39, 0, %s38
      %s41 = sadd.s32 1, %s30
      %s42 = scalar_select %p39, %s41, %s30
      %p43 = scmp.ge.s32.totalorder %s42, 2
      %s44 = scalar_select %p43, 0, %s42
      %s45 = sadd.s32 1, %s29
      %s46 = scalar_select %p43, %s45, %s29
      %p47 = scmp.ge.s32.totalorder %s46, 2
      %s48 = scalar_select %p47, 0, %s46
      %s49 = ssub.s32 %s29, %s48
      %s50 = ssub.s32 %s30, %s44
      %s51 = sor.u32 %s49, %s50
      %p52 = scmp.eq.s32.totalorder %s51, 0
      %s54 = sadd.s32 %s53, 1
      %s55 = scalar_select %p52, %s53, %s54
      %p58 = pneg %p52
      %p59 = scmp.eq.s32.totalorder %s22, 7
      %p60 = por %p58, %p59
      %p61 = scmp.ne.s32.totalorder %s53, %s56
      %p62 = scmp.eq.s32.totalorder %s22, 0
      %p63 = por %p61, %p62
      %p64 = scmp.ne.s32.totalorder %s53, %s56
      %p65 = scmp.eq.s32.totalorder %s27, 7
      %p66 = por %p64, %p65
      %p67 = scmp.ne.s32.totalorder %s56, %s57
      %p68 = scmp.eq.s32.totalorder %s27, 0
      %p69 = por %p67, %p68
      %p70 = scmp.ne.s32.totalorder %s56, %s57
      %p71 = scmp.eq.s32.totalorder %s28, 7
      %p72 = por %p70, %p71
      %p74 = scmp.ne.s32.totalorder %s57, %s73
      %p75 = scmp.eq.s32.totalorder %s28, 0
      %p76 = por %p74, %p75
      %s77 = ssub.s32 %s29, %s48
      %s78 = ssub.s32 %s31, %s40
      %s79 = sor.u32 %s77, %s78
      %p80 = scmp.eq.s32.totalorder %s79, 0
      %s82 = sadd.s32 %s81, 1
      %s83 = scalar_select %p80, %s81, %s82
      %p86 = pneg %p80
      %p87 = scmp.eq.s32.totalorder %s22, 7
      %p88 = por %p86, %p87
      %p89 = scmp.ne.s32.totalorder %s81, %s84
      %p90 = scmp.eq.s32.totalorder %s22, 0
      %p91 = por %p89, %p90
      %p92 = scmp.ne.s32.totalorder %s81, %s84
      %p93 = scmp.eq.s32.totalorder %s27, 7
      %p94 = por %p92, %p93
      %p95 = scmp.ne.s32.totalorder %s84, %s85
      %p96 = scmp.eq.s32.totalorder %s27, 0
      %p97 = por %p95, %p96
      %p98 = scmp.ne.s32.totalorder %s84, %s85
      %p99 = scmp.eq.s32.totalorder %s28, 7
      %p100 = por %p98, %p99
      %p102 = scmp.ne.s32.totalorder %s85, %s101
      %p103 = scmp.eq.s32.totalorder %s28, 0
      %p104 = por %p102, %p103
      %s105 = sadd.s32 %s31, 2
      %s106 = sadd.s32 %s40, 2
      %s107 = ssub.s32 %s29, %s48
      %s108 = ssub.s32 %s105, %s106
      %s109 = sor.u32 %s107, %s108
      %p110 = scmp.eq.s32.totalorder %s109, 0
      %s112 = sadd.s32 %s111, 1
      %s113 = scalar_select %p110, %s111, %s112
      %p116 = pneg %p110
      %p117 = scmp.eq.s32.totalorder %s22, 7
      %p118 = por %p116, %p117
      %p119 = scmp.ne.s32.totalorder %s111, %s114
      %p120 = scmp.eq.s32.totalorder %s22, 0
      %p121 = por %p119, %p120
      %p122 = scmp.ne.s32.totalorder %s111, %s114
      %p123 = scmp.eq.s32.totalorder %s27, 7
      %p124 = por %p122, %p123
      %p125 = scmp.ne.s32.totalorder %s114, %s115
      %p126 = scmp.eq.s32.totalorder %s27, 0
      %p127 = por %p125, %p126
      %p128 = scmp.ne.s32.totalorder %s114, %s115
      %p129 = scmp.eq.s32.totalorder %s28, 7
      %p130 = por %p128, %p129
      %p132 = scmp.ne.s32.totalorder %s115, %s131
      %p133 = scmp.eq.s32.totalorder %s28, 0
      %p134 = por %p132, %p133
      %s135 = ssub.s32 %s29, %s48
      %s136 = ssub.s32 %s31, %s40
      %s137 = sor.u32 %s135, %s136
      %p138 = scmp.eq.s32.totalorder %s137, 0
      %s140 = sadd.s32 %s139, 1
      %s141 = scalar_select %p138, %s139, %s140
      %p144 = pneg %p138
      %p145 = scmp.eq.s32.totalorder %s22, 7
      %p146 = por %p144, %p145
      %p147 = scmp.ne.s32.totalorder %s139, %s142
      %p148 = scmp.eq.s32.totalorder %s22, 0
      %p149 = por %p147, %p148
      %p150 = scmp.ne.s32.totalorder %s139, %s142
      %p151 = scmp.eq.s32.totalorder %s27, 7
      %p152 = por %p150, %p151
      %p153 = scmp.ne.s32.totalorder %s142, %s143
      %p154 = scmp.eq.s32.totalorder %s27, 0
      %p155 = por %p153, %p154
      %p156 = scmp.ne.s32.totalorder %s142, %s143
      %p157 = scmp.eq.s32.totalorder %s28, 7
      %p158 = por %p156, %p157
      %p160 = scmp.ne.s32.totalorder %s143, %s159
      %p161 = scmp.eq.s32.totalorder %s28, 0
      %p162 = por %p160, %p161
      %s163 = ssub.s32 %s29, %s48
      %s164 = ssub.s32 %s30, %s44
      %s165 = sor.u32 %s163, %s164
      %p166 = scmp.eq.s32.totalorder %s165, 0
      %s168 = sadd.s32 %s167, 1
      %s169 = scalar_select %p166, %s167, %s168
      %p172 = pneg %p166
      %p173 = scmp.eq.s32.totalorder %s22, 7
      %p174 = por %p172, %p173
      %p175 = scmp.ne.s32.totalorder %s167, %s170
      %p176 = scmp.eq.s32.totalorder %s22, 0
      %p177 = por %p175, %p176
      %p178 = scmp.ne.s32.totalorder %s167, %s170
      %p179 = scmp.eq.s32.totalorder %s27, 7
      %p180 = por %p178, %p179
      %p181 = scmp.ne.s32.totalorder %s170, %s171
      %p182 = scmp.eq.s32.totalorder %s27, 0
      %p183 = por %p181, %p182
      %p184 = scmp.ne.s32.totalorder %s170, %s171
      %p185 = scmp.eq.s32.totalorder %s28, 7
      %p186 = por %p184, %p185
      %p188 = scmp.ne.s32.totalorder %s171, %s187
      %p189 = scmp.eq.s32.totalorder %s28, 0
      %p190 = por %p188, %p189
      %p191 = scmp.le.s32.totalorder 1, %s22
      %p192 = scmp.lt.s32.totalorder %s22, 9
      %p193 = pnand %p191, %p192
      %p194 = pneg %p193
      // Predicated region
      $region9: #{tpu_custom_call.1} parent=5 // pred_check
        _
      $region10: #{tpu_custom_call.1} parent=5 // pred_check_branch
        %196 = sbr.rel (%p193) target = $region12
      $region11: #{tpu_custom_call.1} parent=5 // pred_region
        %s197 = ssub.s32 %s22, 1
      $region12: #{tpu_custom_call.1} parent=5 // pred_fallthru
        _
      %p198 = scmp.lt.s32.totalorder %s22, 8
      // Predicated region
      $region13: #{tpu_custom_call.1} parent=5 // pred_check
        %p199 = pneg %p198
      $region14: #{tpu_custom_call.1} parent=5 // pred_check_branch
        %201 = sbr.rel (%p199) target = $region16
      $region15: #{tpu_custom_call.1} parent=5 // pred_region
        // Predicated region
        $region17: #{tpu_custom_call.1} parent=15 // pred_check
          %p202 = pneg %p63
        $region18: #{tpu_custom_call.1} parent=15 // pred_check_branch
          %204 = sbr.rel (%p202) target = $region20
        $region19: #{tpu_custom_call.1} parent=15 // pred_region
          %s205 = sand.u32 %s53, 1
          %s206 = scalar_lea.sflag [#allocation3], %s205
          %s207 = sand.u32 %s53, 1
          %s208 = smul.addr %s207, 8
          %s209 = scalar_lea.vmem [#allocation2], %s208
          %s211 = ssub.s32 128, 128
          %212 = vsyncadd %s206, %s211
          %s213 = smul.addr %s29, 2
          %s214 = sadd.s32 %s30, %s213
          %s215 = smul.addr %s214, 128
          %s216 = scalar_lea.hbm %s0, %s215
          %s218 = sshll.u32 %s209, 4
          %s219 = int_to_ptr.vmem [resolvable:$true] %s218
          %221 = dma.hbm_to_vmem [thread:$0]  %s216, 128, %s219, %s206
        $region20: #{tpu_custom_call.1} parent=15 // pred_fallthru
          _
        // Predicated region
        $region21: #{tpu_custom_call.1} parent=15 // pred_check
          %p222 = pneg %p91
        $region22: #{tpu_custom_call.1} parent=15 // pred_check_branch
          %224 = sbr.rel (%p222) target = $region24
        $region23: #{tpu_custom_call.1} parent=15 // pred_region
          %s225 = sand.u32 %s22, 1
          %s226 = scalar_lea.sflag [#allocation6], %s225
          %s227 = sand.u32 %s81, 1
          %s228 = smul.addr %s227, 128
          %s229 = scalar_lea.vmem [#allocation5], %s228
          %s231 = ssub.s32 2048, 2048
          %232 = vsyncadd %s226, %s231
          %s233 = smul.addr %s29, 64
          %s234 = sadd.s32 %s31, %s233
          %s235 = smul.addr %s234, 128
          %s236 = scalar_lea.hbm %s1, %s235
          %s237 = sshll.u32 %s229, 4
          %s238 = int_to_ptr.vmem [resolvable:$true] %s237
          %243 = dma.hbm_to_vmem [thread:$0]  %s236, 2048, %s238, %s226, 512, 128, 8
        $region24: #{tpu_custom_call.1} parent=15 // pred_fallthru
          _
        // Predicated region
        $region25: #{tpu_custom_call.1} parent=15 // pred_check
          %p244 = pneg %p121
        $region26: #{tpu_custom_call.1} parent=15 // pred_check_branch
          %246 = sbr.rel (%p244) target = $region28
        $region27: #{tpu_custom_call.1} parent=15 // pred_region
          %s247 = sand.u32 %s22, 1
          %s248 = scalar_lea.sflag [#allocation6], %s247
          %s249 = sand.u32 %s111, 1
          %s250 = smul.addr %s249, 128
          %s251 = scalar_lea.vmem [#allocation7], %s250
          %s252 = sadd.s32 %s31, 2
          %s254 = ssub.s32 2048, 2048
          %255 = vsyncadd %s248, %s254
          %s256 = smul.addr %s29, 64
          %s257 = sadd.s32 %s252, %s256
          %s258 = smul.addr %s257, 128
          %s259 = scalar_lea.hbm %s2, %s258
          %s260 = sshll.u32 %s251, 4
          %s261 = int_to_ptr.vmem [resolvable:$true] %s260
          %266 = dma.hbm_to_vmem [thread:$0]  %s259, 2048, %s261, %s248, 512, 128, 8
        $region28: #{tpu_custom_call.1} parent=15 // pred_fallthru
          _
        // Predicated region
        $region29: #{tpu_custom_call.1} parent=15 // pred_check
          %p267 = pneg %p149
        $region30: #{tpu_custom_call.1} parent=15 // pred_check_branch
          %269 = sbr.rel (%p267) target = $region32
        $region31: #{tpu_custom_call.1} parent=15 // pred_region
          %s270 = sand.u32 %s139, 1
          %s271 = scalar_lea.sflag [#allocation9], %s270
          %s272 = sand.u32 %s139, 1
          %s273 = smul.addr %s272, 128
          %s274 = scalar_lea.vmem [#allocation8], %s273
          %s275 = smul.u32 16, %s31
          %s277 = ssub.s32 2048, 2048
          %278 = vsyncadd %s271, %s277
          %s279 = smul.addr %s29, 32
          %s280 = sadd.s32 %s275, %s279
          %s281 = smul.addr %s280, 128
          %s282 = scalar_lea.hbm %s3, %s281
          %s283 = sshll.u32 %s274, 4
          %s284 = int_to_ptr.vmem [resolvable:$true] %s283
          %289 = dma.hbm_to_vmem [thread:$0]  %s282, 2048, %s284, %s271, 128, 128, 8
        $region32: #{tpu_custom_call.1} parent=15 // pred_fallthru
          _
      $region16: #{tpu_custom_call.1} parent=5 // pred_fallthru
        _
      %p290 = scmp.le.s32.totalorder 1, %s22
      %p291 = scmp.lt.s32.totalorder %s22, 9
      %p292 = pnand %p290, %p291
      %p293 = pneg %p292
      // Predicated region
      $region33: #{tpu_custom_call.1} parent=5 // pred_check
        _
      $region34: #{tpu_custom_call.1} parent=5 // pred_check_branch
        %295 = sbr.rel (%p292) target = $region36
      $region35: #{tpu_custom_call.1} parent=5 // pred_region
        %s296 = ssub.s32 %s22, 1
        %s297 = sand.u32 %s56, 1
        %s298 = scalar_lea.sflag [#allocation3], %s297
        %s299 = sand.u32 %s56, 1
        %s300 = smul.addr %s299, 8
        %s301 = scalar_lea.vmem [#allocation2], %s300
        // Predicated region
        $region37: #{tpu_custom_call.1} parent=35 // pred_check
          %p302 = pneg %p69
        $region38: #{tpu_custom_call.1} parent=35 // pred_check_branch
          %304 = sbr.rel (%p302) target = $region40
        $region39: #{tpu_custom_call.1} parent=35 // pred_region
          %305 = dma.done %s298, 128
        $region40: #{tpu_custom_call.1} parent=35 // pred_fallthru
          _
        %s306 = sand.u32 %s27, 1
        %s307 = scalar_lea.sflag [#allocation6], %s306
        %s308 = sand.u32 %s84, 1
        %s309 = smul.addr %s308, 128
        %s310 = scalar_lea.vmem [#allocation5], %s309
        // Predicated region
        $region41: #{tpu_custom_call.1} parent=35 // pred_check
          %p311 = pneg %p97
        $region42: #{tpu_custom_call.1} parent=35 // pred_check_branch
          %313 = sbr.rel (%p311) target = $region44
        $region43: #{tpu_custom_call.1} parent=35 // pred_region
          %314 = dma.done %s307, 2048
        $region44: #{tpu_custom_call.1} parent=35 // pred_fallthru
          _
        %s315 = sand.u32 %s27, 1
        %s316 = scalar_lea.sflag [#allocation6], %s315
        %s317 = sand.u32 %s114, 1
        %s318 = smul.addr %s317, 128
        %s319 = scalar_lea.vmem [#allocation7], %s318
        // Predicated region
        $region45: #{tpu_custom_call.1} parent=35 // pred_check
          %p320 = pneg %p127
        $region46: #{tpu_custom_call.1} parent=35 // pred_check_branch
          %322 = sbr.rel (%p320) target = $region48
        $region47: #{tpu_custom_call.1} parent=35 // pred_region
          %323 = dma.done %s316, 2048
        $region48: #{tpu_custom_call.1} parent=35 // pred_fallthru
          _
        %s324 = sand.u32 %s142, 1
        %s325 = scalar_lea.sflag [#allocation9], %s324
        %s326 = sand.u32 %s142, 1
        %s327 = smul.addr %s326, 128
        %s328 = scalar_lea.vmem [#allocation8], %s327
        // Predicated region
        $region49: #{tpu_custom_call.1} parent=35 // pred_check
          %p329 = pneg %p155
        $region50: #{tpu_custom_call.1} parent=35 // pred_check_branch
          %331 = sbr.rel (%p329) target = $region52
        $region51: #{tpu_custom_call.1} parent=35 // pred_region
          %332 = dma.done %s325, 2048
        $region52: #{tpu_custom_call.1} parent=35 // pred_fallthru
          _
        %s333 = sand.u32 %s56, 1
        %s334 = scalar_lea.sflag [#allocation3], %s333
        %s335 = sand.u32 %s56, 1
        %s336 = smul.addr %s335, 8
        %s337 = scalar_lea.vmem [#allocation2], %s336
        %p338 = pneg %p69
        %p339 = pneg %p66
        %s340 = sand.u32 %s27, 1
        %s341 = scalar_lea.sflag [#allocation6], %s340
        %s342 = sand.u32 %s84, 1
        %s343 = smul.addr %s342, 128
        %s344 = scalar_lea.vmem [#allocation5], %s343
        %p345 = pneg %p97
        %p346 = pneg %p94
        %s347 = sand.u32 %s27, 1
        %s348 = scalar_lea.sflag [#allocation6], %s347
        %s349 = sand.u32 %s114, 1
        %s350 = smul.addr %s349, 128
        %s351 = scalar_lea.vmem [#allocation7], %s350
        %p352 = pneg %p127
        %p353 = pneg %p124
        %s354 = sand.u32 %s142, 1
        %s355 = scalar_lea.sflag [#allocation9], %s354
        %s356 = sand.u32 %s142, 1
        %s357 = smul.addr %s356, 128
        %s358 = scalar_lea.vmem [#allocation8], %s357
        %p359 = pneg %p155
        %p360 = pneg %p152
        %p361 = pneg %p183
        %p362 = pneg %p180
        %s363 = sand.u32 %s170, 1
        %s364 = scalar_lea.sflag [#allocation4], %s363
        %s365 = sand.u32 %s170, 1
        %s366 = smul.addr %s365, 8
        %s367 = scalar_lea.vmem [#allocation10], %s366
        %s368 = sadd.s32 %s34, 2
        %s369 = smul.u32 16, %s34
        %p370 = scmp.eq.s32.totalorder %s34, 0
        // Predicated region
        $region53: #{tpu_custom_call.1} parent=35 // pred_check
          %p371 = pneg %p370
        $region54: #{tpu_custom_call.1} parent=35 // pred_check_branch
          %373 = sbr.rel (%p371) target = $region56
        $region55: #{tpu_custom_call.1} parent=35 // pred_region
          %374 = vst [vmem:[%s367] sm:$0xff] 0.0
        $region56: #{tpu_custom_call.1} parent=35 // pred_fallthru
          _
        %v375 = vld [vmem:[%s301] sm:$0xff]
        %v376 = vld [vmem:[%s310] sm:$0xff]
        %v377 = vld [vmem:[%s310 + $0x8] sm:$0xff]
        %v378 = vld [vmem:[%s310 + $0x10] sm:$0xff]
        %v379 = vld [vmem:[%s310 + $0x18] sm:$0xff]
        %v380 = vld [vmem:[%s310 + $0x20] sm:$0xff]
        %v381 = vld [vmem:[%s310 + $0x28] sm:$0xff]
        %v382 = vld [vmem:[%s310 + $0x30] sm:$0xff]
        %v383 = vld [vmem:[%s310 + $0x38] sm:$0xff]
        %v384 = vld [vmem:[%s310 + $0x40] sm:$0xff]
        %v385 = vld [vmem:[%s310 + $0x48] sm:$0xff]
        %v386 = vld [vmem:[%s310 + $0x50] sm:$0xff]
        %v387 = vld [vmem:[%s310 + $0x58] sm:$0xff]
        %v388 = vld [vmem:[%s310 + $0x60] sm:$0xff]
        %v389 = vld [vmem:[%s310 + $0x68] sm:$0xff]
        %v390 = vld [vmem:[%s310 + $0x70] sm:$0xff]
        %v391 = vld [vmem:[%s310 + $0x78] sm:$0xff]
        %392 = vmatprep.subr.mxu0 0.0
        %393 = vmatpush1.msra.mxu0 %v376
        %394 = vmatprep.subr.mxu0 0.0
        %395 = vmatpush1.msra.mxu0 %v377
        %396 = vmatprep.subr.mxu0 0.0
        %397 = vmatpush1.msra.mxu0 %v378
        %398 = vmatprep.subr.mxu0 0.0
        %399 = vmatpush1.msra.mxu0 %v379
        %400 = vmatprep.subr.mxu0 0.0
        %401 = vmatpush1.msra.mxu0 %v380
        %402 = vmatprep.subr.mxu0 0.0
        %403 = vmatpush1.msra.mxu0 %v381
        %404 = vmatprep.subr.mxu0 0.0
        %405 = vmatpush1.msra.mxu0 %v382
        %406 = vmatprep.subr.mxu0 0.0
        %407 = vmatpush1.msra.mxu0 %v383
        %408 = vmatprep.subr.mxu0 0.0
        %409 = vmatpush1.msra.mxu0 %v384
        %410 = vmatprep.subr.mxu0 0.0
        %411 = vmatpush1.msra.mxu0 %v385
        %412 = vmatprep.subr.mxu0 0.0
        %413 = vmatpush1.msra.mxu0 %v386
        %414 = vmatprep.subr.mxu0 0.0
        %415 = vmatpush1.msra.mxu0 %v387
        %416 = vmatprep.subr.mxu0 0.0
        %417 = vmatpush1.msra.mxu0 %v388
        %418 = vmatprep.subr.mxu0 0.0
        %419 = vmatpush1.msra.mxu0 %v389
        %420 = vmatprep.subr.mxu0 0.0
        %421 = vmatpush1.msra.mxu0 %v390
        %422 = vmatprep.subr.mxu0 0.0
        %423 = vmatpush1.msra.mxu0 %v391
        %424 = vmatprep.subr.mxu0 0.0
        %425 = vmatpush1.msra.mxu0 0.0
        %426 = vmatprep.subr.mxu0 0.0
        %427 = vmatpush1.msra.mxu0 0.0
        %428 = vmatprep.subr.mxu0 0.0
        %429 = vmatpush1.msra.mxu0 0.0
        %430 = vmatprep.subr.mxu0 0.0
        %431 = vmatpush1.msra.mxu0 0.0
        %432 = vmatprep.subr.mxu0 0.0
        %433 = vmatpush1.msra.mxu0 0.0
        %434 = vmatprep.subr.mxu0 0.0
        %435 = vmatpush1.msra.mxu0 0.0
        %436 = vmatprep.subr.mxu0 0.0
        %437 = vmatpush1.msra.mxu0 0.0
        %438 = vmatprep.subr.mxu0 0.0
        %439 = vmatpush1.msra.mxu0 0.0
        %440 = vmatprep.subr.mxu0 0.0
        %441 = vmatpush1.msra.mxu0 0.0
        %442 = vmatprep.subr.mxu0 0.0
        %443 = vmatpush1.msra.mxu0 0.0
        %444 = vmatprep.subr.mxu0 0.0
        %445 = vmatpush1.msra.mxu0 0.0
        %446 = vmatprep.subr.mxu0 0.0
        %447 = vmatpush1.msra.mxu0 0.0
        %448 = vmatprep.subr.mxu0 0.0
        %449 = vmatpush1.msra.mxu0 0.0
        %450 = vmatprep.subr.mxu0 0.0
        %451 = vmatpush1.msra.mxu0 0.0
        %452 = vmatprep.subr.mxu0 0.0
        %453 = vmatpush1.msra.mxu0 0.0
        %454 = vmatprep.subr.mxu0 0.0
        %455 = vmatpush1.msra.mxu0 0.0
        %456 = vmatprep.mubr.f32.mxu0 0.0
        %457 = vmatmul.mubr.f32.gmra.mrb[0].mxu0 %v375
        %v458 = vpop.f32.mrb[0].mxu0
        %v459 = vadd.f32 0.0, %v458
        %v460 = vpop.f32.mrb[0].mxu0
        %461 = vdwg.mxu0
        %v462 = vld [vmem:[%s319] sm:$0xff]
        %v463 = vld [vmem:[%s319 + $0x8] sm:$0xff]
        %v464 = vld [vmem:[%s319 + $0x10] sm:$0xff]
        %v465 = vld [vmem:[%s319 + $0x18] sm:$0xff]
        %v466 = vld [vmem:[%s319 + $0x20] sm:$0xff]
        %v467 = vld [vmem:[%s319 + $0x28] sm:$0xff]
        %v468 = vld [vmem:[%s319 + $0x30] sm:$0xff]
        %v469 = vld [vmem:[%s319 + $0x38] sm:$0xff]
        %v470 = vld [vmem:[%s319 + $0x40] sm:$0xff]
        %v471 = vld [vmem:[%s319 + $0x48] sm:$0xff]
        %v472 = vld [vmem:[%s319 + $0x50] sm:$0xff]
        %v473 = vld [vmem:[%s319 + $0x58] sm:$0xff]
        %v474 = vld [vmem:[%s319 + $0x60] sm:$0xff]
        %v475 = vld [vmem:[%s319 + $0x68] sm:$0xff]
        %v476 = vld [vmem:[%s319 + $0x70] sm:$0xff]
        %v477 = vld [vmem:[%s319 + $0x78] sm:$0xff]
        %478 = vmatprep.subr.mxu0 0.0
        %479 = vmatpush1.msra.mxu0 %v462
        %480 = vmatprep.subr.mxu0 0.0
        %481 = vmatpush1.msra.mxu0 %v463
        %482 = vmatprep.subr.mxu0 0.0
        %483 = vmatpush1.msra.mxu0 %v464
        %484 = vmatprep.subr.mxu0 0.0
        %485 = vmatpush1.msra.mxu0 %v465
        %486 = vmatprep.subr.mxu0 0.0
        %487 = vmatpush1.msra.mxu0 %v466
        %488 = vmatprep.subr.mxu0 0.0
        %489 = vmatpush1.msra.mxu0 %v467
        %490 = vmatprep.subr.mxu0 0.0
        %491 = vmatpush1.msra.mxu0 %v468
        %492 = vmatprep.subr.mxu0 0.0
        %493 = vmatpush1.msra.mxu0 %v469
        %494 = vmatprep.subr.mxu0 0.0
        %495 = vmatpush1.msra.mxu0 %v470
        %496 = vmatprep.subr.mxu0 0.0
        %497 = vmatpush1.msra.mxu0 %v471
        %498 = vmatprep.subr.mxu0 0.0
        %499 = vmatpush1.msra.mxu0 %v472
        %500 = vmatprep.subr.mxu0 0.0
        %501 = vmatpush1.msra.mxu0 %v473
        %502 = vmatprep.subr.mxu0 0.0
        %503 = vmatpush1.msra.mxu0 %v474
        %504 = vmatprep.subr.mxu0 0.0
        %505 = vmatpush1.msra.mxu0 %v475
        %506 = vmatprep.subr.mxu0 0.0
        %507 = vmatpush1.msra.mxu0 %v476
        %508 = vmatprep.subr.mxu0 0.0
        %509 = vmatpush1.msra.mxu0 %v477
        %510 = vmatprep.subr.mxu0 0.0
        %511 = vmatpush1.msra.mxu0 0.0
        %512 = vmatprep.subr.mxu0 0.0
        %513 = vmatpush1.msra.mxu0 0.0
        %514 = vmatprep.subr.mxu0 0.0
        %515 = vmatpush1.msra.mxu0 0.0
        %516 = vmatprep.subr.mxu0 0.0
        %517 = vmatpush1.msra.mxu0 0.0
        %518 = vmatprep.subr.mxu0 0.0
        %519 = vmatpush1.msra.mxu0 0.0
        %520 = vmatprep.subr.mxu0 0.0
        %521 = vmatpush1.msra.mxu0 0.0
        %522 = vmatprep.subr.mxu0 0.0
        %523 = vmatpush1.msra.mxu0 0.0
        %524 = vmatprep.subr.mxu0 0.0
        %525 = vmatpush1.msra.mxu0 0.0
        %526 = vmatprep.subr.mxu0 0.0
        %527 = vmatpush1.msra.mxu0 0.0
        %528 = vmatprep.subr.mxu0 0.0
        %529 = vmatpush1.msra.mxu0 0.0
        %530 = vmatprep.subr.mxu0 0.0
        %531 = vmatpush1.msra.mxu0 0.0
        %532 = vmatprep.subr.mxu0 0.0
        %533 = vmatpush1.msra.mxu0 0.0
        %534 = vmatprep.subr.mxu0 0.0
        %535 = vmatpush1.msra.mxu0 0.0
        %536 = vmatprep.subr.mxu0 0.0
        %537 = vmatpush1.msra.mxu0 0.0
        %538 = vmatprep.subr.mxu0 0.0
        %539 = vmatpush1.msra.mxu0 0.0
        %540 = vmatprep.subr.mxu0 0.0
        %541 = vmatpush1.msra.mxu0 0.0
        %542 = vmatprep.mubr.f32.mxu0 0.0
        %543 = vmatmul.mubr.f32.gmra.mrb[0].mxu0 %v375
        %v544 = vpop.f32.mrb[0].mxu0
        %v545 = vadd.f32 0.0, %v544
        %v546 = vpop.f32.mrb[0].mxu0
        %547 = vdwg.mxu0
        %v548 = vxor.u32 %v459, 2147483648
        %v549 = vmul.f32 %v548, 1.442695
        %v550 = vpow.pop %v549
        %v551 = vadd.f32 %v550, 1.0
        %v552 = vrcp.pop %v551
        %v553 = vmul.f32 1.0, %v552
        %v554 = vmul.f32 %v459, %v553
        %v555 = vmul.f32 %v545, %v554
        %v556 = vld [vmem:[%s367] sm:$0xff]
        %v557 = vld [vmem:[%s328] sm:$0xff]
        %v558 = vld [vmem:[%s328 + $0x8] sm:$0xff]
        %v559 = vld [vmem:[%s328 + $0x10] sm:$0xff]
        %v560 = vld [vmem:[%s328 + $0x18] sm:$0xff]
        %v561 = vld [vmem:[%s328 + $0x20] sm:$0xff]
        %v562 = vld [vmem:[%s328 + $0x28] sm:$0xff]
        %v563 = vld [vmem:[%s328 + $0x30] sm:$0xff]
        %v564 = vld [vmem:[%s328 + $0x38] sm:$0xff]
        %v565 = vld [vmem:[%s328 + $0x40] sm:$0xff]
        %v566 = vld [vmem:[%s328 + $0x48] sm:$0xff]
        %v567 = vld [vmem:[%s328 + $0x50] sm:$0xff]
        %v568 = vld [vmem:[%s328 + $0x58] sm:$0xff]
        %v569 = vld [vmem:[%s328 + $0x60] sm:$0xff]
        %v570 = vld [vmem:[%s328 + $0x68] sm:$0xff]
        %v571 = vld [vmem:[%s328 + $0x70] sm:$0xff]
        %v572 = vld [vmem:[%s328 + $0x78] sm:$0xff]
        %573 = vmatprep.subr.mxu0 0.0
        %574 = vmatpush1.msra.mxu0 %v557
        %575 = vmatprep.subr.mxu0 0.0
        %576 = vmatpush1.msra.mxu0 %v558
        %577 = vmatprep.subr.mxu0 0.0
        %578 = vmatpush1.msra.mxu0 %v559
        %579 = vmatprep.subr.mxu0 0.0
        %580 = vmatpush1.msra.mxu0 %v560
        %581 = vmatprep.subr.mxu0 0.0
        %582 = vmatpush1.msra.mxu0 %v561
        %583 = vmatprep.subr.mxu0 0.0
        %584 = vmatpush1.msra.mxu0 %v562
        %585 = vmatprep.subr.mxu0 0.0
        %586 = vmatpush1.msra.mxu0 %v563
        %587 = vmatprep.subr.mxu0 0.0
        %588 = vmatpush1.msra.mxu0 %v564
        %589 = vmatprep.subr.mxu0 0.0
        %590 = vmatpush1.msra.mxu0 %v565
        %591 = vmatprep.subr.mxu0 0.0
        %592 = vmatpush1.msra.mxu0 %v566
        %593 = vmatprep.subr.mxu0 0.0
        %594 = vmatpush1.msra.mxu0 %v567
        %595 = vmatprep.subr.mxu0 0.0
        %596 = vmatpush1.msra.mxu0 %v568
        %597 = vmatprep.subr.mxu0 0.0
        %598 = vmatpush1.msra.mxu0 %v569
        %599 = vmatprep.subr.mxu0 0.0
        %600 = vmatpush1.msra.mxu0 %v570
        %601 = vmatprep.subr.mxu0 0.0
        %602 = vmatpush1.msra.mxu0 %v571
        %603 = vmatprep.subr.mxu0 0.0
        %604 = vmatpush1.msra.mxu0 %v572
        %605 = vmatprep.subr.mxu0 0.0
        %606 = vmatpush1.msra.mxu0 0.0
        %607 = vmatprep.subr.mxu0 0.0
        %608 = vmatpush1.msra.mxu0 0.0
        %609 = vmatprep.subr.mxu0 0.0
        %610 = vmatpush1.msra.mxu0 0.0
        %611 = vmatprep.subr.mxu0 0.0
        %612 = vmatpush1.msra.mxu0 0.0
        %613 = vmatprep.subr.mxu0 0.0
        %614 = vmatpush1.msra.mxu0 0.0
        %615 = vmatprep.subr.mxu0 0.0
        %616 = vmatpush1.msra.mxu0 0.0
        %617 = vmatprep.subr.mxu0 0.0
        %618 = vmatpush1.msra.mxu0 0.0
        %619 = vmatprep.subr.mxu0 0.0
        %620 = vmatpush1.msra.mxu0 0.0
        %621 = vmatprep.subr.mxu0 0.0
        %622 = vmatpush1.msra.mxu0 0.0
        %623 = vmatprep.subr.mxu0 0.0
        %624 = vmatpush1.msra.mxu0 0.0
        %625 = vmatprep.subr.mxu0 0.0
        %626 = vmatpush1.msra.mxu0 0.0
        %627 = vmatprep.subr.mxu0 0.0
        %628 = vmatpush1.msra.mxu0 0.0
        %629 = vmatprep.subr.mxu0 0.0
        %630 = vmatpush1.msra.mxu0 0.0
        %631 = vmatprep.subr.mxu0 0.0
        %632 = vmatpush1.msra.mxu0 0.0
        %633 = vmatprep.subr.mxu0 0.0
        %634 = vmatpush1.msra.mxu0 0.0
        %635 = vmatprep.subr.mxu0 0.0
        %636 = vmatpush1.msra.mxu0 0.0
        %637 = vmatprep.mubr.f32.mxu0 0.0
        %638 = vmatmul.mubr.f32.gmra.mrb[0].mxu0 %v555
        %v639 = vpop.f32.mrb[0].mxu0
        %v640 = vadd.f32 0.0, %v639
        %v641 = vpop.f32.mrb[0].mxu0
        %642 = vdwg.mxu0
        %v643 = vadd.f32 %v556, %v640
        %644 = vst [vmem:[%s367] sm:$0xff] %v643
        %s645 = sand.u32 %s170, 1
        %s646 = scalar_lea.sflag [#allocation4], %s645
        %s647 = sand.u32 %s170, 1
        %s648 = smul.addr %s647, 8
        %s649 = scalar_lea.vmem [#allocation10], %s648
        // Predicated region
        $region57: #{tpu_custom_call.1} parent=35 // pred_check
          %p650 = pneg %p180
        $region58: #{tpu_custom_call.1} parent=35 // pred_check_branch
          %652 = sbr.rel (%p650) target = $region60
        $region59: #{tpu_custom_call.1} parent=35 // pred_region
          %s654 = ssub.s32 128, 128
          %655 = vsyncadd %s646, %s654
          %s656 = smul.addr %s32, 2
          %s657 = sadd.s32 %s33, %s656
          %s658 = smul.addr %s657, 128
          %s659 = scalar_lea.hbm %s4, %s658
          %s661 = sshll.u32 %s649, 4
          %s662 = int_to_ptr.vmem [resolvable:$true] %s661
          %664 = dma.vmem_to_hbm [thread:$0]  %s662, 128, %s659, %s646
        $region60: #{tpu_custom_call.1} parent=35 // pred_fallthru
          _
      $region36: #{tpu_custom_call.1} parent=5 // pred_fallthru
        _
      %p665 = scmp.le.s32.totalorder 2, %s22
      // Predicated region
      $region61: #{tpu_custom_call.1} parent=5 // pred_check
        %p666 = pneg %p665
      $region62: #{tpu_custom_call.1} parent=5 // pred_check_branch
        %668 = sbr.rel (%p666) target = $region64
      $region63: #{tpu_custom_call.1} parent=5 // pred_region
        %s669 = ssub.s32 %s22, 2
        // Predicated region
        $region65: #{tpu_custom_call.1} parent=63 // pred_check
          %p670 = pneg %p186
        $region66: #{tpu_custom_call.1} parent=63 // pred_check_branch
          %672 = sbr.rel (%p670) target = $region68
        $region67: #{tpu_custom_call.1} parent=63 // pred_region
          %s673 = sand.u32 %s171, 1
          %s674 = scalar_lea.sflag [#allocation4], %s673
          %s675 = sand.u32 %s171, 1
          %s676 = smul.addr %s675, 8
          %s677 = scalar_lea.vmem [#allocation10], %s676
          %678 = dma.done %s674, 128
        $region68: #{tpu_custom_call.1} parent=63 // pred_fallthru
          _
      $region64: #{tpu_custom_call.1} parent=5 // pred_fallthru
        _
    $region6: #{tpu_custom_call.1} parent=1 // loop_footer
      %s26 = sadd.s32 1, %s22
    $region7: #{tpu_custom_call.1} parent=1 // loop_footer_branch
      %21 = sbr.rel target = $region3
    $region8: #{tpu_custom_call.1} parent=1 // loop_exit
      _
    %679 = vsyncpa [#allocation3], 1
    %s680 = scalar_lea.sflag [#allocation3], 1
    %681 = vsyncpa %s680, 1
    %682 = vsyncpa [#allocation6], 1
    %s683 = scalar_lea.sflag [#allocation6], 1
    %684 = vsyncpa %s683, 1
    %685 = vsyncpa [#allocation9], 1
    %s686 = scalar_lea.sflag [#allocation9], 1
    %687 = vsyncpa %s686, 1
    %688 = vsyncpa [#allocation4], 1
    %s689 = scalar_lea.sflag [#allocation4], 1
    %690 = vsyncpa %s689, 1

</llo_original>
